<compile_context>
chip_gen: v7x
topology: tpu7x:2x2x1
jax: 0.10.0
libtpu: 0.0.40
codegen_flags: <defaults>
</compile_context>

<pallas_src>
import functools

import jax
import jax.numpy as jnp
import numpy as np
from jax.experimental import pallas as pl
from jax.experimental.pallas import tpu as pltpu

# pooling configs of the module: (kernel, stride, padding)
POOLS = ((2, 2, 0), (3, 2, 0), (5, 2, 1))


def _out_size(n, k, s, p):
    """PyTorch AvgPool2d output size with ceil_mode=True."""
    o = -(-(n + 2 * p - k) // s) + 1
    if (o - 1) * s >= n + p:
        o -= 1
    return o


def _pick_batch_block(n, hp):
    """Largest divisor of n that (a) keeps >= 2 grid blocks when n >= 2
    (v7x megacore) and (b) targets M = b_blk * hp around 256 rows."""
    target = max(1, 256 // max(1, hp))
    cap = max(1, n // 2) if n >= 2 else 1
    best = 1
    for d in range(1, n + 1):
        if n % d == 0 and d <= min(target, cap):
            best = d
    return best


def _amp_kernel(planes_ref, other_ref, inv_ref, w_ref, out_ref, *,
                pad_lead, cin, cout, hp, wp):
    """planes_ref: (4, B, Hh, Wh*Cin)   parity planes, (W,C) folded on lanes
       other_ref : (B, Hp, Wp*Cout)
       inv_ref   : (3, Hp, Wp*Cin)      reciprocal valid-count maps
       w_ref     : (Wp*(3*Cin+Cout), Wp*Cout)  block-diagonal fused 1x1 weight
       out_ref   : (B, Hp, Wp*Cout)"""
    b = other_ref.shape[0]
    wf_in = wp * cin

    def pool_sum(k, stride, pool_pad):
        # window sum as k*k statically-offset contiguous slice adds over the
        # parity-decomposed, zero-padded input (stride-2 folded into parity).
        acc = None
        for dh in range(k):
            for dw in range(k):
                sh = dh - pool_pad + pad_lead          # static offsets
                sw = dw - pool_pad + pad_lead
                pidx = (sh % 2) * 2 + (sw % 2)
                h0 = sh // 2
                w0 = (sw // 2) * cin
                v = planes_ref[pidx, :, h0:h0 + hp, w0:w0 + wf_in]
                v = v.astype(jnp.float32)
                acc = v if acc is None else acc + v
        return acc                                     # (B, Hp, Wp*Cin)

    # average pools: window sum * reciprocal valid-element count
    x1 = pool_sum(*POOLS[0]) * inv_ref[0]
    x2 = pool_sum(*POOLS[1]) * inv_ref[1]
    x3 = pool_sum(*POOLS[2]) * inv_ref[2]
    oth = other_ref[...].astype(jnp.float32)           # (B, Hp, Wp*Cout)

    # channel concat + conv1x1 as ONE matmul against the block-diagonal fused
    # weight; result lands directly in the folded (b, h, w*cout) layout.
    feat = jnp.concatenate([x1, x2, x3, oth], axis=-1)  # (B, Hp, Wp*(3Cin+Cout))
    m = b * hp
    kb = wp * (3 * cin + cout)
    acc = jnp.dot(feat.reshape(m, kb), w_ref[...],
                  preferred_element_type=jnp.float32)   # (M, Wp*Cout)
    res = jnp.maximum(acc, 0.0).reshape(b, hp, wp * cout)
    out_ref[...] = res.astype(out_ref.dtype)


def amp_forward(x_nchw, other_nchw, w_full):
    """x_nchw: (N, Cin, H, W), other_nchw: (N, Cout, Hp, Wp),
    w_full: (3*Cin + Cout, Cout) 1x1-conv weight (transposed, bias-free)."""
    N, Cin, H, W = x_nchw.shape
    _, Cout, Hp_o, Wp_o = other_nchw.shape

    Hp = _out_size(H, *POOLS[0])
    Wp = _out_size(W, *POOLS[0])
    for (k, s, p) in POOLS[1:]:
        assert _out_size(H, k, s, p) == Hp and _out_size(W, k, s, p) == Wp, \
            "pool outputs must match spatially for concat"
    assert (Hp_o, Wp_o) == (Hp, Wp), "`other` spatial dims must match pooled dims"

    pad_lead = max(p for (_, _, p) in POOLS)
    need_h = max((Hp - 1) * s - p + k - 1 + pad_lead for (k, s, p) in POOLS) + 1
    need_w = max((Wp - 1) * s - p + k - 1 + pad_lead for (k, s, p) in POOLS) + 1
    H_pad = need_h + (need_h % 2)
    W_pad = need_w + (need_w % 2)
    Hh, Wh = H_pad // 2, W_pad // 2

    # --- single fused pad + parity-decompose + (W,C)->lane fold over the input
    xp = jnp.pad(x_nchw, ((0, 0), (0, 0),
                          (pad_lead, H_pad - H - pad_lead),
                          (pad_lead, W_pad - W - pad_lead)))
    planes = (xp.reshape(N, Cin, Hh, 2, Wh, 2)
                .transpose(3, 5, 0, 2, 4, 1)            # (2, 2, N, Hh, Wh, Cin)
                .reshape(4, N, Hh, Wh * Cin))           # fold (Wh, Cin) on lanes

    # `other`: NCHW -> folded (N, Hp, Wp*Cout)  (tiny tensor, one pass)
    other = other_nchw.transpose(0, 2, 3, 1).reshape(N, Hp, Wp * Cout)

    # --- reciprocal valid-count maps (exact count_include_pad=False / ceil_mode)
    def inv_map(k, s, p):
        hs = np.arange(Hp) * s - p
        he = np.minimum(hs + k, H)
        hs = np.maximum(hs, 0)
        ws = np.arange(Wp) * s - p
        we = np.minimum(ws + k, W)
        ws = np.maximum(ws, 0)
        cnt = (he - hs)[:, None] * (we - ws)[None, :]          # (Hp, Wp)
        inv = np.broadcast_to((1.0 / cnt)[:, :, None], (Hp, Wp, Cin))
        return inv.reshape(Hp, Wp * Cin)

    inv_all = jnp.asarray(np.stack([inv_map(*pc) for pc in POOLS], axis=0),
                          jnp.float32)                          # (3, Hp, Wp*Cin)

    # --- fused block-diagonal 1x1-conv weight for the folded-lane matmul:
    #     W_big[(g, w, ci), (w', co)] = W_g[ci, co] * [w == w']
    eye = jnp.eye(Wp, dtype=jnp.float32)
    wf = w_full.astype(jnp.float32)
    w_blocks = [jnp.kron(eye, wf[g * Cin:(g + 1) * Cin, :]) for g in range(3)]
    w_blocks.append(jnp.kron(eye, wf[3 * Cin:, :]))
    w_big = jnp.concatenate(w_blocks, axis=0)   # (Wp*(3*Cin+Cout), Wp*Cout)

    # --- grid: batch-blocked, >= 2 blocks when possible (v7x 2 TensorCores)
    b_blk = _pick_batch_block(N, Hp)
    grid = (N // b_blk,)

    kernel = functools.partial(_amp_kernel, pad_lead=pad_lead,
                               cin=Cin, cout=Cout, hp=Hp, wp=Wp)

    out_folded = pl.pallas_call(
        kernel,
        out_shape=jax.ShapeDtypeStruct((N, Hp, Wp * Cout), x_nchw.dtype),
        grid=grid,
        in_specs=[
            pl.BlockSpec((4, b_blk, Hh, Wh * Cin), lambda i: (0, i, 0, 0)),
            pl.BlockSpec((b_blk, Hp, Wp * Cout), lambda i: (i, 0, 0)),
            pl.BlockSpec((3, Hp, Wp * Cin), lambda i: (0, 0, 0)),
            pl.BlockSpec((Wp * (3 * Cin + Cout), Wp * Cout), lambda i: (0, 0)),
        ],
        out_specs=pl.BlockSpec((b_blk, Hp, Wp * Cout), lambda i: (i, 0, 0)),
        compiler_params=pltpu.CompilerParams(dimension_semantics=("parallel",)),
    )(planes, other, inv_all, w_big)

    # unfold + back to NCHW (single output pass; NCHW is the module interface)
    return out_folded.reshape(N, Hp, Wp, Cout).transpose(0, 3, 1, 2)


def _reference_numpy(x_nchw, other_nchw, w_full):
    """Pure-numpy replica of the PyTorch forward (sanity check)."""
    x = np.asarray(x_nchw, np.float64)
    other = np.asarray(other_nchw, np.float64)
    Wm = np.asarray(w_full, np.float64)

    def pool(a, k, s, p):
        N, C, H, Wd = a.shape
        Hp = _out_size(H, k, s, p)
        Wp = _out_size(Wd, k, s, p)
        out = np.zeros((N, C, Hp, Wp), np.float64)
        for oh in range(Hp):
            hs = oh * s - p
            he = min(hs + k, H)
            hs = max(hs, 0)
            for ow in range(Wp):
                ws = ow * s - p
                we = min(ws + k, Wd)
                ws = max(ws, 0)
                out[:, :, oh, ow] = a[:, :, hs:he, ws:we].mean(axis=(2, 3))
        return out

    x1 = pool(x, *POOLS[0])
    x2 = pool(x, *POOLS[1])
    x3 = pool(x, *POOLS[2])
    feat = np.concatenate([x1, x2, x3, other], axis=1)
    out = np.einsum('nchw,cd->ndhw', feat, Wm)
    return np.maximum(out, 0.0)


if __name__ == "__main__":
    # small shapes consistent with the module
    N, Cin, H, W = 2, 4, 16, 16
    Cout = 8
    Hp = _out_size(H, *POOLS[0])          # = 8
    Wp = _out_size(W, *POOLS[0])          # = 8

    key = jax.random.PRNGKey(0)
    kx, ko, kw = jax.random.split(key, 3)
    x = jax.random.normal(kx, (N, Cin, H, W), jnp.float32)
    other = jax.random.normal(ko, (N, Cout, Hp, Wp), jnp.float32)
    # deterministic conv1x1 weight (Cout, 3*Cin+Cout, 1, 1) stored transposed
    w_full = 0.1 * jax.random.normal(kw, (3 * Cin + Cout, Cout), jnp.float32)

    out = amp_forward(x, other, w_full)
    out = jax.block_until_ready(out)

    ref = _reference_numpy(x, other, w_full)
    assert out.shape == ref.shape, (out.shape, ref.shape)
    assert np.allclose(np.asarray(out), ref, rtol=1e-2, atol=1e-2), \
        float(np.max(np.abs(np.asarray(out) - ref)))

    print("KERNEL_OK")
</pallas_src>

<mosaic_0001>
module attributes {stable_mosaic.version = 11 : i64} {
  func.func @_amp_kernel(%arg0: i32, %arg1: memref<4x1x10x40xf32, #tpu.memory_space<vmem>>, %arg2: memref<1x8x64xf32, #tpu.memory_space<vmem>>, %arg3: memref<3x8x32xf32, #tpu.memory_space<vmem>>, %arg4: memref<160x64xf32, #tpu.memory_space<vmem>>, %arg5: memref<1x8x64xf32, #tpu.memory_space<vmem>>) attributes {dimension_semantics = [#tpu.dimension_semantics<parallel>], iteration_bounds = array<i64: 2>, scalar_prefetch = 0 : i64, scratch_operands = 0 : i64, tpu.core_type = #tpu.core_type<tc>, window_params = [{transform_indices = @transform_0, window_bounds = array<i64: 4, 1, 10, 40>}, {transform_indices = @transform_1, window_bounds = array<i64: 1, 8, 64>}, {pipeline_mode = #tpu.pipeline_mode<synchronous>, transform_indices = @transform_2, window_bounds = array<i64: 3, 8, 32>}, {pipeline_mode = #tpu.pipeline_mode<synchronous>, transform_indices = @transform_3, window_bounds = array<i64: 160, 64>}, {transform_indices = @transform_4, window_bounds = array<i64: 1, 8, 64>}]} {
    %c3 = arith.constant 3 : index
    %c0 = arith.constant 0 : index
    %c0_0 = arith.constant 0 : index
    %c0_1 = arith.constant 0 : index
    %0 = vector.load %arg1[%c3, %c0, %c0_0, %c0_1] : memref<4x1x10x40xf32, #tpu.memory_space<vmem>>, vector<1x1x8x32xf32>
    %1 = vector.shape_cast %0 : vector<1x1x8x32xf32> to vector<1x8x32xf32>
    %c2 = arith.constant 2 : index
    %c0_2 = arith.constant 0 : index
    %c0_3 = arith.constant 0 : index
    %c4 = arith.constant 4 : index
    %2 = vector.load %arg1[%c2, %c0_2, %c0_3, %c4] : memref<4x1x10x40xf32, #tpu.memory_space<vmem>>, vector<1x1x8x32xf32>
    %3 = vector.shape_cast %2 : vector<1x1x8x32xf32> to vector<1x8x32xf32>
    %4 = arith.addf %1, %3 : vector<1x8x32xf32>
    %c1 = arith.constant 1 : index
    %c0_4 = arith.constant 0 : index
    %c1_5 = arith.constant 1 : index
    %c0_6 = arith.constant 0 : index
    %5 = vector.load %arg1[%c1, %c0_4, %c1_5, %c0_6] : memref<4x1x10x40xf32, #tpu.memory_space<vmem>>, vector<1x1x8x32xf32>
    %6 = vector.shape_cast %5 : vector<1x1x8x32xf32> to vector<1x8x32xf32>
    %7 = arith.addf %4, %6 : vector<1x8x32xf32>
    %c0_7 = arith.constant 0 : index
    %c0_8 = arith.constant 0 : index
    %c1_9 = arith.constant 1 : index
    %c4_10 = arith.constant 4 : index
    %8 = vector.load %arg1[%c0_7, %c0_8, %c1_9, %c4_10] : memref<4x1x10x40xf32, #tpu.memory_space<vmem>>, vector<1x1x8x32xf32>
    %9 = vector.shape_cast %8 : vector<1x1x8x32xf32> to vector<1x8x32xf32>
    %10 = arith.addf %7, %9 : vector<1x8x32xf32>
    %c0_11 = arith.constant 0 : index
    %c0_12 = arith.constant 0 : index
    %c0_13 = arith.constant 0 : index
    %11 = vector.load %arg3[%c0_11, %c0_12, %c0_13] : memref<3x8x32xf32, #tpu.memory_space<vmem>>, vector<1x8x32xf32>
    %12 = vector.shape_cast %11 : vector<1x8x32xf32> to vector<8x32xf32>
    %13 = vector.shape_cast %12 : vector<8x32xf32> to vector<1x8x32xf32>
    %14 = arith.mulf %10, %13 : vector<1x8x32xf32>
    %c3_14 = arith.constant 3 : index
    %c0_15 = arith.constant 0 : index
    %c0_16 = arith.constant 0 : index
    %c0_17 = arith.constant 0 : index
    %15 = vector.load %arg1[%c3_14, %c0_15, %c0_16, %c0_17] : memref<4x1x10x40xf32, #tpu.memory_space<vmem>>, vector<1x1x8x32xf32>
    %16 = vector.shape_cast %15 : vector<1x1x8x32xf32> to vector<1x8x32xf32>
    %c2_18 = arith.constant 2 : index
    %c0_19 = arith.constant 0 : index
    %c0_20 = arith.constant 0 : index
    %c4_21 = arith.constant 4 : index
    %17 = vector.load %arg1[%c2_18, %c0_19, %c0_20, %c4_21] : memref<4x1x10x40xf32, #tpu.memory_space<vmem>>, vector<1x1x8x32xf32>
    %18 = vector.shape_cast %17 : vector<1x1x8x32xf32> to vector<1x8x32xf32>
    %19 = arith.addf %16, %18 : vector<1x8x32xf32>
    %c3_22 = arith.constant 3 : index
    %c0_23 = arith.constant 0 : index
    %c0_24 = arith.constant 0 : index
    %c4_25 = arith.constant 4 : index
    %20 = vector.load %arg1[%c3_22, %c0_23, %c0_24, %c4_25] : memref<4x1x10x40xf32, #tpu.memory_space<vmem>>, vector<1x1x8x32xf32>
    %21 = vector.shape_cast %20 : vector<1x1x8x32xf32> to vector<1x8x32xf32>
    %22 = arith.addf %19, %21 : vector<1x8x32xf32>
    %c1_26 = arith.constant 1 : index
    %c0_27 = arith.constant 0 : index
    %c1_28 = arith.constant 1 : index
    %c0_29 = arith.constant 0 : index
    %23 = vector.load %arg1[%c1_26, %c0_27, %c1_28, %c0_29] : memref<4x1x10x40xf32, #tpu.memory_space<vmem>>, vector<1x1x8x32xf32>
    %24 = vector.shape_cast %23 : vector<1x1x8x32xf32> to vector<1x8x32xf32>
    %25 = arith.addf %22, %24 : vector<1x8x32xf32>
    %c0_30 = arith.constant 0 : index
    %c0_31 = arith.constant 0 : index
    %c1_32 = arith.constant 1 : index
    %c4_33 = arith.constant 4 : index
    %26 = vector.load %arg1[%c0_30, %c0_31, %c1_32, %c4_33] : memref<4x1x10x40xf32, #tpu.memory_space<vmem>>, vector<1x1x8x32xf32>
    %27 = vector.shape_cast %26 : vector<1x1x8x32xf32> to vector<1x8x32xf32>
    %28 = arith.addf %25, %27 : vector<1x8x32xf32>
    %c1_34 = arith.constant 1 : index
    %c0_35 = arith.constant 0 : index
    %c1_36 = arith.constant 1 : index
    %c4_37 = arith.constant 4 : index
    %29 = vector.load %arg1[%c1_34, %c0_35, %c1_36, %c4_37] : memref<4x1x10x40xf32, #tpu.memory_space<vmem>>, vector<1x1x8x32xf32>
    %30 = vector.shape_cast %29 : vector<1x1x8x32xf32> to vector<1x8x32xf32>
    %31 = arith.addf %28, %30 : vector<1x8x32xf32>
    %c3_38 = arith.constant 3 : index
    %c0_39 = arith.constant 0 : index
    %c1_40 = arith.constant 1 : index
    %c0_41 = arith.constant 0 : index
    %32 = vector.load %arg1[%c3_38, %c0_39, %c1_40, %c0_41] : memref<4x1x10x40xf32, #tpu.memory_space<vmem>>, vector<1x1x8x32xf32>
    %33 = vector.shape_cast %32 : vector<1x1x8x32xf32> to vector<1x8x32xf32>
    %34 = arith.addf %31, %33 : vector<1x8x32xf32>
    %c2_42 = arith.constant 2 : index
    %c0_43 = arith.constant 0 : index
    %c1_44 = arith.constant 1 : index
    %c4_45 = arith.constant 4 : index
    %35 = vector.load %arg1[%c2_42, %c0_43, %c1_44, %c4_45] : memref<4x1x10x40xf32, #tpu.memory_space<vmem>>, vector<1x1x8x32xf32>
    %36 = vector.shape_cast %35 : vector<1x1x8x32xf32> to vector<1x8x32xf32>
    %37 = arith.addf %34, %36 : vector<1x8x32xf32>
    %c3_46 = arith.constant 3 : index
    %c0_47 = arith.constant 0 : index
    %c1_48 = arith.constant 1 : index
    %c4_49 = arith.constant 4 : index
    %38 = vector.load %arg1[%c3_46, %c0_47, %c1_48, %c4_49] : memref<4x1x10x40xf32, #tpu.memory_space<vmem>>, vector<1x1x8x32xf32>
    %39 = vector.shape_cast %38 : vector<1x1x8x32xf32> to vector<1x8x32xf32>
    %40 = arith.addf %37, %39 : vector<1x8x32xf32>
    %c1_50 = arith.constant 1 : index
    %c0_51 = arith.constant 0 : index
    %c0_52 = arith.constant 0 : index
    %41 = vector.load %arg3[%c1_50, %c0_51, %c0_52] : memref<3x8x32xf32, #tpu.memory_space<vmem>>, vector<1x8x32xf32>
    %42 = vector.shape_cast %41 : vector<1x8x32xf32> to vector<8x32xf32>
    %43 = vector.shape_cast %42 : vector<8x32xf32> to vector<1x8x32xf32>
    %44 = arith.mulf %40, %43 : vector<1x8x32xf32>
    %c0_53 = arith.constant 0 : index
    %c0_54 = arith.constant 0 : index
    %c0_55 = arith.constant 0 : index
    %c0_56 = arith.constant 0 : index
    %45 = vector.load %arg1[%c0_53, %c0_54, %c0_55, %c0_56] : memref<4x1x10x40xf32, #tpu.memory_space<vmem>>, vector<1x1x8x32xf32>
    %46 = vector.shape_cast %45 : vector<1x1x8x32xf32> to vector<1x8x32xf32>
    %c1_57 = arith.constant 1 : index
    %c0_58 = arith.constant 0 : index
    %c0_59 = arith.constant 0 : index
    %c0_60 = arith.constant 0 : index
    %47 = vector.load %arg1[%c1_57, %c0_58, %c0_59, %c0_60] : memref<4x1x10x40xf32, #tpu.memory_space<vmem>>, vector<1x1x8x32xf32>
    %48 = vector.shape_cast %47 : vector<1x1x8x32xf32> to vector<1x8x32xf32>
    %49 = arith.addf %46, %48 : vector<1x8x32xf32>
    %c0_61 = arith.constant 0 : index
    %c0_62 = arith.constant 0 : index
    %c0_63 = arith.constant 0 : index
    %c4_64 = arith.constant 4 : index
    %50 = vector.load %arg1[%c0_61, %c0_62, %c0_63, %c4_64] : memref<4x1x10x40xf32, #tpu.memory_space<vmem>>, vector<1x1x8x32xf32>
    %51 = vector.shape_cast %50 : vector<1x1x8x32xf32> to vector<1x8x32xf32>
    %52 = arith.addf %49, %51 : vector<1x8x32xf32>
    %c1_65 = arith.constant 1 : index
    %c0_66 = arith.constant 0 : index
    %c0_67 = arith.constant 0 : index
    %c4_68 = arith.constant 4 : index
    %53 = vector.load %arg1[%c1_65, %c0_66, %c0_67, %c4_68] : memref<4x1x10x40xf32, #tpu.memory_space<vmem>>, vector<1x1x8x32xf32>
    %54 = vector.shape_cast %53 : vector<1x1x8x32xf32> to vector<1x8x32xf32>
    %55 = arith.addf %52, %54 : vector<1x8x32xf32>
    %c0_69 = arith.constant 0 : index
    %c0_70 = arith.constant 0 : index
    %c0_71 = arith.constant 0 : index
    %c8 = arith.constant 8 : index
    %56 = vector.load %arg1[%c0_69, %c0_70, %c0_71, %c8] : memref<4x1x10x40xf32, #tpu.memory_space<vmem>>, vector<1x1x8x32xf32>
    %57 = vector.shape_cast %56 : vector<1x1x8x32xf32> to vector<1x8x32xf32>
    %58 = arith.addf %55, %57 : vector<1x8x32xf32>
    %c2_72 = arith.constant 2 : index
    %c0_73 = arith.constant 0 : index
    %c0_74 = arith.constant 0 : index
    %c0_75 = arith.constant 0 : index
    %59 = vector.load %arg1[%c2_72, %c0_73, %c0_74, %c0_75] : memref<4x1x10x40xf32, #tpu.memory_space<vmem>>, vector<1x1x8x32xf32>
    %60 = vector.shape_cast %59 : vector<1x1x8x32xf32> to vector<1x8x32xf32>
    %61 = arith.addf %58, %60 : vector<1x8x32xf32>
    %c3_76 = arith.constant 3 : index
    %c0_77 = arith.constant 0 : index
    %c0_78 = arith.constant 0 : index
    %c0_79 = arith.constant 0 : index
    %62 = vector.load %arg1[%c3_76, %c0_77, %c0_78, %c0_79] : memref<4x1x10x40xf32, #tpu.memory_space<vmem>>, vector<1x1x8x32xf32>
    %63 = vector.shape_cast %62 : vector<1x1x8x32xf32> to vector<1x8x32xf32>
    %64 = arith.addf %61, %63 : vector<1x8x32xf32>
    %c2_80 = arith.constant 2 : index
    %c0_81 = arith.constant 0 : index
    %c0_82 = arith.constant 0 : index
    %c4_83 = arith.constant 4 : index
    %65 = vector.load %arg1[%c2_80, %c0_81, %c0_82, %c4_83] : memref<4x1x10x40xf32, #tpu.memory_space<vmem>>, vector<1x1x8x32xf32>
    %66 = vector.shape_cast %65 : vector<1x1x8x32xf32> to vector<1x8x32xf32>
    %67 = arith.addf %64, %66 : vector<1x8x32xf32>
    %c3_84 = arith.constant 3 : index
    %c0_85 = arith.constant 0 : index
    %c0_86 = arith.constant 0 : index
    %c4_87 = arith.constant 4 : index
    %68 = vector.load %arg1[%c3_84, %c0_85, %c0_86, %c4_87] : memref<4x1x10x40xf32, #tpu.memory_space<vmem>>, vector<1x1x8x32xf32>
    %69 = vector.shape_cast %68 : vector<1x1x8x32xf32> to vector<1x8x32xf32>
    %70 = arith.addf %67, %69 : vector<1x8x32xf32>
    %c2_88 = arith.constant 2 : index
    %c0_89 = arith.constant 0 : index
    %c0_90 = arith.constant 0 : index
    %c8_91 = arith.constant 8 : index
    %71 = vector.load %arg1[%c2_88, %c0_89, %c0_90, %c8_91] : memref<4x1x10x40xf32, #tpu.memory_space<vmem>>, vector<1x1x8x32xf32>
    %72 = vector.shape_cast %71 : vector<1x1x8x32xf32> to vector<1x8x32xf32>
    %73 = arith.addf %70, %72 : vector<1x8x32xf32>
    %c0_92 = arith.constant 0 : index
    %c0_93 = arith.constant 0 : index
    %c1_94 = arith.constant 1 : index
    %c0_95 = arith.constant 0 : index
    %74 = vector.load %arg1[%c0_92, %c0_93, %c1_94, %c0_95] : memref<4x1x10x40xf32, #tpu.memory_space<vmem>>, vector<1x1x8x32xf32>
    %75 = vector.shape_cast %74 : vector<1x1x8x32xf32> to vector<1x8x32xf32>
    %76 = arith.addf %73, %75 : vector<1x8x32xf32>
    %c1_96 = arith.constant 1 : index
    %c0_97 = arith.constant 0 : index
    %c1_98 = arith.constant 1 : index
    %c0_99 = arith.constant 0 : index
    %77 = vector.load %arg1[%c1_96, %c0_97, %c1_98, %c0_99] : memref<4x1x10x40xf32, #tpu.memory_space<vmem>>, vector<1x1x8x32xf32>
    %78 = vector.shape_cast %77 : vector<1x1x8x32xf32> to vector<1x8x32xf32>
    %79 = arith.addf %76, %78 : vector<1x8x32xf32>
    %c0_100 = arith.constant 0 : index
    %c0_101 = arith.constant 0 : index
    %c1_102 = arith.constant 1 : index
    %c4_103 = arith.constant 4 : index
    %80 = vector.load %arg1[%c0_100, %c0_101, %c1_102, %c4_103] : memref<4x1x10x40xf32, #tpu.memory_space<vmem>>, vector<1x1x8x32xf32>
    %81 = vector.shape_cast %80 : vector<1x1x8x32xf32> to vector<1x8x32xf32>
    %82 = arith.addf %79, %81 : vector<1x8x32xf32>
    %c1_104 = arith.constant 1 : index
    %c0_105 = arith.constant 0 : index
    %c1_106 = arith.constant 1 : index
    %c4_107 = arith.constant 4 : index
    %83 = vector.load %arg1[%c1_104, %c0_105, %c1_106, %c4_107] : memref<4x1x10x40xf32, #tpu.memory_space<vmem>>, vector<1x1x8x32xf32>
    %84 = vector.shape_cast %83 : vector<1x1x8x32xf32> to vector<1x8x32xf32>
    %85 = arith.addf %82, %84 : vector<1x8x32xf32>
    %c0_108 = arith.constant 0 : index
    %c0_109 = arith.constant 0 : index
    %c1_110 = arith.constant 1 : index
    %c8_111 = arith.constant 8 : index
    %86 = vector.load %arg1[%c0_108, %c0_109, %c1_110, %c8_111] : memref<4x1x10x40xf32, #tpu.memory_space<vmem>>, vector<1x1x8x32xf32>
    %87 = vector.shape_cast %86 : vector<1x1x8x32xf32> to vector<1x8x32xf32>
    %88 = arith.addf %85, %87 : vector<1x8x32xf32>
    %c2_112 = arith.constant 2 : index
    %c0_113 = arith.constant 0 : index
    %c1_114 = arith.constant 1 : index
    %c0_115 = arith.constant 0 : index
    %89 = vector.load %arg1[%c2_112, %c0_113, %c1_114, %c0_115] : memref<4x1x10x40xf32, #tpu.memory_space<vmem>>, vector<1x1x8x32xf32>
    %90 = vector.shape_cast %89 : vector<1x1x8x32xf32> to vector<1x8x32xf32>
    %91 = arith.addf %88, %90 : vector<1x8x32xf32>
    %c3_116 = arith.constant 3 : index
    %c0_117 = arith.constant 0 : index
    %c1_118 = arith.constant 1 : index
    %c0_119 = arith.constant 0 : index
    %92 = vector.load %arg1[%c3_116, %c0_117, %c1_118, %c0_119] : memref<4x1x10x40xf32, #tpu.memory_space<vmem>>, vector<1x1x8x32xf32>
    %93 = vector.shape_cast %92 : vector<1x1x8x32xf32> to vector<1x8x32xf32>
    %94 = arith.addf %91, %93 : vector<1x8x32xf32>
    %c2_120 = arith.constant 2 : index
    %c0_121 = arith.constant 0 : index
    %c1_122 = arith.constant 1 : index
    %c4_123 = arith.constant 4 : index
    %95 = vector.load %arg1[%c2_120, %c0_121, %c1_122, %c4_123] : memref<4x1x10x40xf32, #tpu.memory_space<vmem>>, vector<1x1x8x32xf32>
    %96 = vector.shape_cast %95 : vector<1x1x8x32xf32> to vector<1x8x32xf32>
    %97 = arith.addf %94, %96 : vector<1x8x32xf32>
    %c3_124 = arith.constant 3 : index
    %c0_125 = arith.constant 0 : index
    %c1_126 = arith.constant 1 : index
    %c4_127 = arith.constant 4 : index
    %98 = vector.load %arg1[%c3_124, %c0_125, %c1_126, %c4_127] : memref<4x1x10x40xf32, #tpu.memory_space<vmem>>, vector<1x1x8x32xf32>
    %99 = vector.shape_cast %98 : vector<1x1x8x32xf32> to vector<1x8x32xf32>
    %100 = arith.addf %97, %99 : vector<1x8x32xf32>
    %c2_128 = arith.constant 2 : index
    %c0_129 = arith.constant 0 : index
    %c1_130 = arith.constant 1 : index
    %c8_131 = arith.constant 8 : index
    %101 = vector.load %arg1[%c2_128, %c0_129, %c1_130, %c8_131] : memref<4x1x10x40xf32, #tpu.memory_space<vmem>>, vector<1x1x8x32xf32>
    %102 = vector.shape_cast %101 : vector<1x1x8x32xf32> to vector<1x8x32xf32>
    %103 = arith.addf %100, %102 : vector<1x8x32xf32>
    %c0_132 = arith.constant 0 : index
    %c0_133 = arith.constant 0 : index
    %c2_134 = arith.constant 2 : index
    %c0_135 = arith.constant 0 : index
    %104 = vector.load %arg1[%c0_132, %c0_133, %c2_134, %c0_135] : memref<4x1x10x40xf32, #tpu.memory_space<vmem>>, vector<1x1x8x32xf32>
    %105 = vector.shape_cast %104 : vector<1x1x8x32xf32> to vector<1x8x32xf32>
    %106 = arith.addf %103, %105 : vector<1x8x32xf32>
    %c1_136 = arith.constant 1 : index
    %c0_137 = arith.constant 0 : index
    %c2_138 = arith.constant 2 : index
    %c0_139 = arith.constant 0 : index
    %107 = vector.load %arg1[%c1_136, %c0_137, %c2_138, %c0_139] : memref<4x1x10x40xf32, #tpu.memory_space<vmem>>, vector<1x1x8x32xf32>
    %108 = vector.shape_cast %107 : vector<1x1x8x32xf32> to vector<1x8x32xf32>
    %109 = arith.addf %106, %108 : vector<1x8x32xf32>
    %c0_140 = arith.constant 0 : index
    %c0_141 = arith.constant 0 : index
    %c2_142 = arith.constant 2 : index
    %c4_143 = arith.constant 4 : index
    %110 = vector.load %arg1[%c0_140, %c0_141, %c2_142, %c4_143] : memref<4x1x10x40xf32, #tpu.memory_space<vmem>>, vector<1x1x8x32xf32>
    %111 = vector.shape_cast %110 : vector<1x1x8x32xf32> to vector<1x8x32xf32>
    %112 = arith.addf %109, %111 : vector<1x8x32xf32>
    %c1_144 = arith.constant 1 : index
    %c0_145 = arith.constant 0 : index
    %c2_146 = arith.constant 2 : index
    %c4_147 = arith.constant 4 : index
    %113 = vector.load %arg1[%c1_144, %c0_145, %c2_146, %c4_147] : memref<4x1x10x40xf32, #tpu.memory_space<vmem>>, vector<1x1x8x32xf32>
    %114 = vector.shape_cast %113 : vector<1x1x8x32xf32> to vector<1x8x32xf32>
    %115 = arith.addf %112, %114 : vector<1x8x32xf32>
    %c0_148 = arith.constant 0 : index
    %c0_149 = arith.constant 0 : index
    %c2_150 = arith.constant 2 : index
    %c8_151 = arith.constant 8 : index
    %116 = vector.load %arg1[%c0_148, %c0_149, %c2_150, %c8_151] : memref<4x1x10x40xf32, #tpu.memory_space<vmem>>, vector<1x1x8x32xf32>
    %117 = vector.shape_cast %116 : vector<1x1x8x32xf32> to vector<1x8x32xf32>
    %118 = arith.addf %115, %117 : vector<1x8x32xf32>
    %c2_152 = arith.constant 2 : index
    %c0_153 = arith.constant 0 : index
    %c0_154 = arith.constant 0 : index
    %119 = vector.load %arg3[%c2_152, %c0_153, %c0_154] : memref<3x8x32xf32, #tpu.memory_space<vmem>>, vector<1x8x32xf32>
    %120 = vector.shape_cast %119 : vector<1x8x32xf32> to vector<8x32xf32>
    %121 = vector.shape_cast %120 : vector<8x32xf32> to vector<1x8x32xf32>
    %122 = arith.mulf %118, %121 : vector<1x8x32xf32>
    %c0_155 = arith.constant 0 : index
    %c0_156 = arith.constant 0 : index
    %c0_157 = arith.constant 0 : index
    %123 = vector.load %arg2[%c0_155, %c0_156, %c0_157] : memref<1x8x64xf32, #tpu.memory_space<vmem>>, vector<1x8x64xf32>
    %124 = tpu.concatenate %14, %44, %122, %123 in 2 : vector<1x8x32xf32>, vector<1x8x32xf32>, vector<1x8x32xf32>, vector<1x8x64xf32> -> vector<1x8x160xf32>
    %125 = vector.shape_cast %124 : vector<1x8x160xf32> to vector<8x160xf32>
    %c0_158 = arith.constant 0 : index
    %c0_159 = arith.constant 0 : index
    %126 = vector.load %arg4[%c0_158, %c0_159] : memref<160x64xf32, #tpu.memory_space<vmem>>, vector<160x64xf32>
    %cst = arith.constant dense<0.000000e+00> : vector<8x64xf32>
    %127 = tpu.matmul %125, %126, %cst {dimension_numbers = #tpu.dot_dimension_numbers<[1], [0], [0], [1], [0, 0, 1, 1], [], []>} : vector<8x160xf32>, vector<160x64xf32>, vector<8x64xf32> -> vector<8x64xf32>
    %cst_160 = arith.constant 0.000000e+00 : f32
    %128 = vector.broadcast %cst_160 : f32 to vector<8x64xf32>
    %129 = arith.maximumf %127, %128 : vector<8x64xf32>
    %130 = vector.shape_cast %129 : vector<8x64xf32> to vector<1x8x64xf32>
    %c0_161 = arith.constant 0 : index
    %c0_162 = arith.constant 0 : index
    %c0_163 = arith.constant 0 : index
    %131 = vector.load %arg5[%c0_161, %c0_162, %c0_163] : memref<1x8x64xf32, #tpu.memory_space<vmem>>, vector<1x8x64xf32>
    tpu.vector_store %arg5[%c0_161, %c0_162, %c0_163], %130 {strides = array<i32>} : memref<1x8x64xf32, #tpu.memory_space<vmem>>, vector<1x8x64xf32>,
    return
  }
  func.func @transform_0(%arg0: i32) -> (i32, i32, i32, i32) {
    %c0_i32 = arith.constant 0 : i32
    %c0_i32_0 = arith.constant 0 : i32
    %c0_i32_1 = arith.constant 0 : i32
    %c0_i32_2 = arith.constant 0 : i32
    return %c0_i32, %arg0, %c0_i32_0, %c0_i32_1 : i32, i32, i32, i32
  }
  func.func @transform_1(%arg0: i32) -> (i32, i32, i32) {
    %c0_i32 = arith.constant 0 : i32
    %c0_i32_0 = arith.constant 0 : i32
    %c0_i32_1 = arith.constant 0 : i32
    return %arg0, %c0_i32, %c0_i32_0 : i32, i32, i32
  }
  func.func @transform_2(%arg0: i32) -> (i32, i32, i32) {
    %c0_i32 = arith.constant 0 : i32
    %c0_i32_0 = arith.constant 0 : i32
    %c0_i32_1 = arith.constant 0 : i32
    %c0_i32_2 = arith.constant 0 : i32
    return %c0_i32, %c0_i32_0, %c0_i32_1 : i32, i32, i32
  }
  func.func @transform_3(%arg0: i32) -> (i32, i32) {
    %c0_i32 = arith.constant 0 : i32
    %c0_i32_0 = arith.constant 0 : i32
    %c0_i32_1 = arith.constant 0 : i32
    return %c0_i32, %c0_i32_0 : i32, i32
  }
  func.func @transform_4(%arg0: i32) -> (i32, i32, i32) {
    %c0_i32 = arith.constant 0 : i32
    %c0_i32_0 = arith.constant 0 : i32
    %c0_i32_1 = arith.constant 0 : i32
    return %arg0, %c0_i32, %c0_i32_0 : i32, i32, i32
  }
}

</mosaic_0001>

<llo_original>
// kernel: tpu_custom_call.1
$region0: #{tpu_custom_call.1}
  #allocation0 [shape = 'u32[]', space=smem, size = 0x4, offset = 0x4, fixed_abs, tag = 'smem constant byte address 0x4 - core index']
  #allocation1 [shape = 'u32[144,128]{1,0:T(1,128)}', space=vmem, size = 0x12000, scoped, tag = 'internal scratch']
  %s0 = inlined_call_operand.vmem [shape: f32[4,2,10,40], index: 0, kind: input, shape index: {}]
  %s1 = inlined_call_operand.vmem [shape: f32[2,8,64], index: 1, kind: input, shape index: {}]
  %s2 = inlined_call_operand.vmem [shape: f32[3,8,32], index: 2, kind: input, shape index: {}]
  %s3 = inlined_call_operand.vmem [shape: f32[160,64], index: 3, kind: input, shape index: {}]
  %s4 = inlined_call_operand.hbm [shape: f32[2,8,64], index: 4, kind: output, shape index: {}]
  %s5 = sld [smem:[#allocation0]]
  $region87: #{tpu_custom_call.1} parent=0
    _
  %s7 = ssub.s32 1, %s5
  %s8 = scalar_select 0, %s7, %s5
  $region1: #{tpu_custom_call.1} parent=0
    #allocation2 [shape = 'u8[65536]{0}', space=vmem, size = 0x10000, scoped, tag = 'input window, operand 0']
    #allocation3 [shape = 'u8[8192]{0}', space=vmem, size = 0x2000, scoped, tag = 'output window, operand 0']
    #allocation4 [shape = 's32[2]{0}', space=sflag, size = 0x8, scoped, tag = 'scoped memory for tpu_custom_call.1']
    %9 = vsyncpa [#allocation4], 0
    %s10 = scalar_lea.sflag [#allocation4], 1
    %11 = vsyncpa %s10, 0
    loop: start=0, step=1, limit=4
    $region2: #{tpu_custom_call.1} parent=1 // loop_pre_header
      _
    $region3: #{tpu_custom_call.1} parent=1 // loop_header
      %s13 = sphi 0, %s17
      %p14 = scmp.ge.s32.totalorder %s13, 4
      %s23 = sphi 0, %s25
      %s26 = sphi 0, %s23
      %s27 = sphi 0, %s26
      %s43 = sphi 0, %s27
      %s49 = sphi 0, %s51
      %s52 = sphi 0, %s49
      %s53 = sphi 0, %s52
      %s69 = sphi 0, %s53
      %s73 = sphi 0, %s73
      %s75 = sphi 0, %s73
      %s76 = sphi 0, %s75
      %s90 = sphi 0, %s76
      %s94 = sphi 0, %s94
      %s96 = sphi 0, %s94
      %s97 = sphi 0, %s96
      %s111 = sphi 0, %s97
      %s117 = sphi 0, %s119
      %s120 = sphi 0, %s117
      %s121 = sphi 0, %s120
      %s137 = sphi 0, %s121
    $region4: #{tpu_custom_call.1} parent=1 // loop_header_branch
      %16 = sbr.rel (%p14) target = $region8
    $region5: #{tpu_custom_call.1} parent=1 // loop_body
      %s18 = ssub.s32 %s13, 1
      %s19 = ssub.s32 %s13, 2
      %s20 = sadd.s32 %s13, 1
      %s21 = ssub.s32 %s13, %s20
      %p22 = scmp.eq.s32.totalorder %s21, 0
      %s24 = sadd.s32 %s23, 1
      %s25 = scalar_select %p22, %s23, %s24
      %p28 = pneg %p22
      %p29 = scmp.eq.s32.totalorder %s13, 1
      %p30 = por %p28, %p29
      %p31 = scmp.ne.s32.totalorder %s23, %s26
      %p32 = scmp.eq.s32.totalorder %s13, 0
      %p33 = por %p31, %p32
      %p34 = scmp.ne.s32.totalorder %s23, %s26
      %p35 = scmp.eq.s32.totalorder %s18, 1
      %p36 = por %p34, %p35
      %p37 = scmp.ne.s32.totalorder %s26, %s27
      %p38 = scmp.eq.s32.totalorder %s18, 0
      %p39 = por %p37, %p38
      %p40 = scmp.ne.s32.totalorder %s26, %s27
      %p41 = scmp.eq.s32.totalorder %s19, 1
      %p42 = por %p40, %p41
      %p44 = scmp.ne.s32.totalorder %s27, %s43
      %p45 = scmp.eq.s32.totalorder %s19, 0
      %p46 = por %p44, %p45
      %s47 = ssub.s32 %s13, %s20
      %p48 = scmp.eq.s32.totalorder %s47, 0
      %s50 = sadd.s32 %s49, 1
      %s51 = scalar_select %p48, %s49, %s50
      %p54 = pneg %p48
      %p55 = scmp.eq.s32.totalorder %s13, 1
      %p56 = por %p54, %p55
      %p57 = scmp.ne.s32.totalorder %s49, %s52
      %p58 = scmp.eq.s32.totalorder %s13, 0
      %p59 = por %p57, %p58
      %p60 = scmp.ne.s32.totalorder %s49, %s52
      %p61 = scmp.eq.s32.totalorder %s18, 1
      %p62 = por %p60, %p61
      %p63 = scmp.ne.s32.totalorder %s52, %s53
      %p64 = scmp.eq.s32.totalorder %s18, 0
      %p65 = por %p63, %p64
      %p66 = scmp.ne.s32.totalorder %s52, %s53
      %p67 = scmp.eq.s32.totalorder %s19, 1
      %p68 = por %p66, %p67
      %p70 = scmp.ne.s32.totalorder %s53, %s69
      %p71 = scmp.eq.s32.totalorder %s19, 0
      %p72 = por %p70, %p71
      %s74 = sadd.s32 %s73, 1
      %p77 = scmp.eq.s32.totalorder %s13, 1
      %p78 = scmp.ne.s32.totalorder %s73, %s75
      %p79 = scmp.eq.s32.totalorder %s13, 0
      %p80 = por %p78, %p79
      %p81 = scmp.ne.s32.totalorder %s73, %s75
      %p82 = scmp.eq.s32.totalorder %s18, 1
      %p83 = por %p81, %p82
      %p84 = scmp.ne.s32.totalorder %s75, %s76
      %p85 = scmp.eq.s32.totalorder %s18, 0
      %p86 = por %p84, %p85
      %p87 = scmp.ne.s32.totalorder %s75, %s76
      %p88 = scmp.eq.s32.totalorder %s19, 1
      %p89 = por %p87, %p88
      %p91 = scmp.ne.s32.totalorder %s76, %s90
      %p92 = scmp.eq.s32.totalorder %s19, 0
      %p93 = por %p91, %p92
      %s95 = sadd.s32 %s94, 1
      %p98 = scmp.eq.s32.totalorder %s13, 1
      %p99 = scmp.ne.s32.totalorder %s94, %s96
      %p100 = scmp.eq.s32.totalorder %s13, 0
      %p101 = por %p99, %p100
      %p102 = scmp.ne.s32.totalorder %s94, %s96
      %p103 = scmp.eq.s32.totalorder %s18, 1
      %p104 = por %p102, %p103
      %p105 = scmp.ne.s32.totalorder %s96, %s97
      %p106 = scmp.eq.s32.totalorder %s18, 0
      %p107 = por %p105, %p106
      %p108 = scmp.ne.s32.totalorder %s96, %s97
      %p109 = scmp.eq.s32.totalorder %s19, 1
      %p110 = por %p108, %p109
      %p112 = scmp.ne.s32.totalorder %s97, %s111
      %p113 = scmp.eq.s32.totalorder %s19, 0
      %p114 = por %p112, %p113
      %s115 = ssub.s32 %s13, %s20
      %p116 = scmp.eq.s32.totalorder %s115, 0
      %s118 = sadd.s32 %s117, 1
      %s119 = scalar_select %p116, %s117, %s118
      %p122 = pneg %p116
      %p123 = scmp.eq.s32.totalorder %s13, 1
      %p124 = por %p122, %p123
      %p125 = scmp.ne.s32.totalorder %s117, %s120
      %p126 = scmp.eq.s32.totalorder %s13, 0
      %p127 = por %p125, %p126
      %p128 = scmp.ne.s32.totalorder %s117, %s120
      %p129 = scmp.eq.s32.totalorder %s18, 1
      %p130 = por %p128, %p129
      %p131 = scmp.ne.s32.totalorder %s120, %s121
      %p132 = scmp.eq.s32.totalorder %s18, 0
      %p133 = por %p131, %p132
      %p134 = scmp.ne.s32.totalorder %s120, %s121
      %p135 = scmp.eq.s32.totalorder %s19, 1
      %p136 = por %p134, %p135
      %p138 = scmp.ne.s32.totalorder %s121, %s137
      %p139 = scmp.eq.s32.totalorder %s19, 0
      %p140 = por %p138, %p139
      %p141 = scmp.le.s32.totalorder 1, %s13
      %p142 = scmp.lt.s32.totalorder %s13, 3
      %p143 = pnand %p141, %p142
      %p144 = pneg %p143
      // Predicated region
      $region9: #{tpu_custom_call.1} parent=5 // pred_check
        _
      $region10: #{tpu_custom_call.1} parent=5 // pred_check_branch
        %146 = sbr.rel (%p143) target = $region12
      $region11: #{tpu_custom_call.1} parent=5 // pred_region
        %s147 = ssub.s32 %s13, 1
        // Predicated region
        $region13: #{tpu_custom_call.1} parent=11 // pred_check
          %p148 = pneg %p86
        $region14: #{tpu_custom_call.1} parent=11 // pred_check_branch
          %150 = sbr.rel (%p148) target = $region16
        $region15: #{tpu_custom_call.1} parent=11 // pred_region
          _
        $region16: #{tpu_custom_call.1} parent=11 // pred_fallthru
          _
        // Predicated region
        $region17: #{tpu_custom_call.1} parent=11 // pred_check
          %p151 = pneg %p107
        $region18: #{tpu_custom_call.1} parent=11 // pred_check_branch
          %153 = sbr.rel (%p151) target = $region20
        $region19: #{tpu_custom_call.1} parent=11 // pred_region
          _
        $region20: #{tpu_custom_call.1} parent=11 // pred_fallthru
          _
      $region12: #{tpu_custom_call.1} parent=5 // pred_fallthru
        _
      %p154 = scmp.lt.s32.totalorder %s13, 2
      // Predicated region
      $region21: #{tpu_custom_call.1} parent=5 // pred_check
        %p155 = pneg %p154
      $region22: #{tpu_custom_call.1} parent=5 // pred_check_branch
        %157 = sbr.rel (%p155) target = $region24
      $region23: #{tpu_custom_call.1} parent=5 // pred_region
        // Predicated region
        $region25: #{tpu_custom_call.1} parent=23 // pred_check
          %p158 = pneg %p33
        $region26: #{tpu_custom_call.1} parent=23 // pred_check_branch
          %160 = sbr.rel (%p158) target = $region28
        $region27: #{tpu_custom_call.1} parent=23 // pred_region
          %s161 = sand.u32 %s23, 1
          %s162 = sand.u32 %s23, 1
          %s163 = smul.addr %s162, 64
          %s164 = scalar_lea.vmem [#allocation2], %s163
          %s165 = smul.addr %s13, 2
          %s166 = smul.addr %s165, 8
          %s167 = scalar_lea.vmem %s0, %s166
          // Predicated region
          $region29: #{tpu_custom_call.1} parent=27 // pred_check
            _
          $region30: #{tpu_custom_call.1} parent=27 // pred_check_branch
            %169 = sbr.rel (0) target = $region32
          $region31: #{tpu_custom_call.1} parent=27 // pred_region
            // Predicated region
            $region33: #{tpu_custom_call.1} parent=31 // pred_check
              _
            $region34: #{tpu_custom_call.1} parent=31 // pred_check_branch
              %171 = sbr.rel (0) target = $region36
            $region35: #{tpu_custom_call.1} parent=31 // pred_region
              // Predicated region
              $region48: #{tpu_custom_call.1} parent=35 // pred_check
                _
              $region49: #{tpu_custom_call.1} parent=35 // pred_check_branch
                %200 = sbr.rel (0) target = $region51
              $region50: #{tpu_custom_call.1} parent=35 // pred_region
                loop: start=0, step=1, limit=1
                $region52: #{tpu_custom_call.1} parent=50 // loop_pre_header
                  _
                $region53: #{tpu_custom_call.1} parent=50 // loop_header
                  %s202 = sphi 0, %s206
                  %p203 = scmp.ge.s32.totalorder %s202, 1
                  %s207 = sphi %s167, %s167
                  %s208 = sphi %s164, %s164
                $region54: #{tpu_custom_call.1} parent=50 // loop_header_branch
                  %205 = sbr.rel (%p203) target = $region58
                $region55: #{tpu_custom_call.1} parent=50 // loop_body
                  %v209 = vld [vmem:[%s207] sm:$0xff]
                  %210 = vst [vmem:[%s208] sm:$0xff] %v209
                  %v211 = vld [vmem:[%s207 + $0x8] sm:$0xff]
                  %212 = vst [vmem:[%s208 + $0x8] sm:$0xff] %v211
                  %v213 = vld [vmem:[%s207 + $0x20] sm:$0xff]
                  %214 = vst [vmem:[%s208 + $0x10] sm:$0xff] %v213
                  %v215 = vld [vmem:[%s207 + $0x28] sm:$0xff]
                  %216 = vst [vmem:[%s208 + $0x18] sm:$0xff] %v215
                  %v217 = vld [vmem:[%s207 + $0x40] sm:$0xff]
                  %218 = vst [vmem:[%s208 + $0x20] sm:$0xff] %v217
                  %v219 = vld [vmem:[%s207 + $0x48] sm:$0xff]
                  %220 = vst [vmem:[%s208 + $0x28] sm:$0xff] %v219
                  %v221 = vld [vmem:[%s207 + $0x60] sm:$0xff]
                  %222 = vst [vmem:[%s208 + $0x30] sm:$0xff] %v221
                  %v223 = vld [vmem:[%s207 + $0x68] sm:$0xff]
                  %224 = vst [vmem:[%s208 + $0x38] sm:$0xff] %v223
                $region56: #{tpu_custom_call.1} parent=50 // loop_footer
                  %s206 = sadd.s32 1, %s202
                $region57: #{tpu_custom_call.1} parent=50 // loop_footer_branch
                  %201 = sbr.rel target = $region53
                $region58: #{tpu_custom_call.1} parent=50 // loop_exit
                  _
              $region51: #{tpu_custom_call.1} parent=35 // pred_fallthru
                _
              // Predicated region
              $region59: #{tpu_custom_call.1} parent=35 // pred_check
                _
              $region60: #{tpu_custom_call.1} parent=35 // pred_check_branch
                %226 = sbr.rel target = $region62
              $region61: #{tpu_custom_call.1} parent=35 // pred_region
                _
              $region62: #{tpu_custom_call.1} parent=35 // pred_fallthru
                _
            $region36: #{tpu_custom_call.1} parent=31 // pred_fallthru
              _
            // Predicated region
            $region37: #{tpu_custom_call.1} parent=31 // pred_check
              _
            $region38: #{tpu_custom_call.1} parent=31 // pred_check_branch
              %173 = sbr.rel target = $region40
            $region39: #{tpu_custom_call.1} parent=31 // pred_region
              loop: start=0, step=1, limit=1
              $region41: #{tpu_custom_call.1} parent=39 // loop_pre_header
                _
              $region42: #{tpu_custom_call.1} parent=39 // loop_header
                %s176 = sphi 0, %s180
                %p177 = scmp.ge.s32.totalorder %s176, 1
                %s181 = sphi %s167, %s167
                %s182 = sphi %s164, %s164
              $region43: #{tpu_custom_call.1} parent=39 // loop_header_branch
                %179 = sbr.rel (%p177) target = $region47
              $region44: #{tpu_custom_call.1} parent=39 // loop_body
                %v183 = vld [vmem:[%s181] sm:$0xff]
                %184 = vst [vmem:[%s182] sm:$0xff] %v183
                %v185 = vld [vmem:[%s181 + $0x8] sm:$0xff]
                %186 = vst [vmem:[%s182 + $0x8] sm:$0xff] %v185
                %v187 = vld [vmem:[%s181 + $0x20] sm:$0xff]
                %188 = vst [vmem:[%s182 + $0x10] sm:$0xff] %v187
                %v189 = vld [vmem:[%s181 + $0x28] sm:$0xff]
                %190 = vst [vmem:[%s182 + $0x18] sm:$0xff] %v189
                %v191 = vld [vmem:[%s181 + $0x40] sm:$0xff]
                %192 = vst [vmem:[%s182 + $0x20] sm:$0xff] %v191
                %v193 = vld [vmem:[%s181 + $0x48] sm:$0xff]
                %194 = vst [vmem:[%s182 + $0x28] sm:$0xff] %v193
                %v195 = vld [vmem:[%s181 + $0x60] sm:$0xff]
                %196 = vst [vmem:[%s182 + $0x30] sm:$0xff] %v195
                %v197 = vld [vmem:[%s181 + $0x68] sm:$0xff]
                %198 = vst [vmem:[%s182 + $0x38] sm:$0xff] %v197
              $region45: #{tpu_custom_call.1} parent=39 // loop_footer
                %s180 = sadd.s32 1, %s176
              $region46: #{tpu_custom_call.1} parent=39 // loop_footer_branch
                %175 = sbr.rel target = $region42
              $region47: #{tpu_custom_call.1} parent=39 // loop_exit
                _
            $region40: #{tpu_custom_call.1} parent=31 // pred_fallthru
              _
          $region32: #{tpu_custom_call.1} parent=27 // pred_fallthru
            _
          %227 = vnop
        $region28: #{tpu_custom_call.1} parent=23 // pred_fallthru
          _
        // Predicated region
        $region63: #{tpu_custom_call.1} parent=23 // pred_check
          %p228 = pneg %p59
        $region64: #{tpu_custom_call.1} parent=23 // pred_check_branch
          %230 = sbr.rel (%p228) target = $region66
        $region65: #{tpu_custom_call.1} parent=23 // pred_region
          %p231 = scmp.lt.s32.totalorder %s13, 1
          %s232 = scalar_select %p231, %s13, 1
          %s233 = smul.addr %s232, 8
          %s234 = scalar_lea.vmem %s1, %s233
        $region66: #{tpu_custom_call.1} parent=23 // pred_fallthru
          _
      $region24: #{tpu_custom_call.1} parent=5 // pred_fallthru
        _
      %p235 = scmp.le.s32.totalorder 1, %s13
      %p236 = scmp.lt.s32.totalorder %s13, 3
      %p237 = pnand %p235, %p236
      %p238 = pneg %p237
      // Predicated region
      $region67: #{tpu_custom_call.1} parent=5 // pred_check
        _
      $region68: #{tpu_custom_call.1} parent=5 // pred_check_branch
        %240 = sbr.rel (%p237) target = $region70
      $region69: #{tpu_custom_call.1} parent=5 // pred_region
        %s241 = ssub.s32 %s13, 1
        %s242 = sand.u32 %s26, 1
        %s243 = sand.u32 %s26, 1
        %s244 = smul.addr %s243, 64
        %s245 = scalar_lea.vmem [#allocation2], %s244
        // Predicated region
        $region71: #{tpu_custom_call.1} parent=69 // pred_check
          %p246 = pneg %p39
        $region72: #{tpu_custom_call.1} parent=69 // pred_check_branch
          %248 = sbr.rel (%p246) target = $region74
        $region73: #{tpu_custom_call.1} parent=69 // pred_region
          _
        $region74: #{tpu_custom_call.1} parent=69 // pred_fallthru
          _
        %s249 = sand.u32 %s26, 1
        %s250 = sand.u32 %s26, 1
        %s251 = smul.addr %s250, 64
        %s252 = scalar_lea.vmem [#allocation2], %s251
        %p253 = pneg %p39
        %p254 = pneg %p36
        %p255 = scmp.lt.s32.totalorder %s18, 1
        %s256 = scalar_select %p255, %s18, 1
        %s257 = smul.addr %s256, 8
        %s258 = scalar_lea.vmem %s1, %s257
        %p259 = pneg %p65
        %p260 = pneg %p62
        %p261 = pneg %p86
        %p262 = pneg %p83
        %p263 = pneg %p107
        %p264 = pneg %p104
        %p265 = pneg %p133
        %p266 = pneg %p130
        %s267 = sand.u32 %s120, 1
        %s268 = scalar_lea.sflag [#allocation4], %s267
        %s269 = sand.u32 %s120, 1
        %s270 = smul.addr %s269, 8
        %s271 = scalar_lea.vmem [#allocation3], %s270
        %p272 = scmp.lt.s32.totalorder %s18, 1
        %s273 = scalar_select %p272, %s18, 1
        %s274 = smul.addr %s273, 8
        %s275 = scalar_lea.vmem %s1, %s274
        %s276 = scalar_lea.vmem %s245, 48 [#allocation2]
        %v277 = vld [vmem:[%s276] sm:$0xff]
        %s278 = scalar_lea.vmem %s245, 32 [#allocation2]
        %v279 = vld [vmem:[%s278] sm:$0xff]
        %281 = vrot.lane.b32.xlu0 %v279, 124
        %v282 = vpop.permute.xlu0 %281
        %v284 = vadd.f32 %v277, %v282
        %s285 = scalar_lea.vmem %s245, 16 [#allocation2]
        %v286 = vld [vmem:[%s285 + $0x1] sm:$0xff]
        %v287 = vadd.f32 %v284, %v286
        %v288 = vld [vmem:[%s245 + $0x1] sm:$0xff]
        %290 = vrot.lane.b32.xlu0 %v288, 124
        %v291 = vpop.permute.xlu0 %290
        %v293 = vadd.f32 %v287, %v291
        %v294 = vld [vmem:[%s2] sm:$0xff]
        %v295 = vmul.f32 %v293, %v294
        %297 = vrot.lane.b32.xlu0 %v277, 124
        %v298 = vpop.permute.xlu0 %297
        %v300 = vadd.f32 %v284, %v298
        %v301 = vadd.f32 %v300, %v286
        %v302 = vadd.f32 %v301, %v291
        %304 = vrot.lane.b32.xlu0 %v286, 124
        %v305 = vpop.permute.xlu0 %304
        %v307 = vadd.f32 %v302, %v305
        %v308 = vld [vmem:[%s276 + $0x1] sm:$0xff]
        %v309 = vadd.f32 %v307, %v308
        %v310 = vld [vmem:[%s278 + $0x1] sm:$0xff]
        %312 = vrot.lane.b32.xlu0 %v310, 124
        %v313 = vpop.permute.xlu0 %312
        %v315 = vadd.f32 %v309, %v313
        %317 = vrot.lane.b32.xlu0 %v308, 124
        %v318 = vpop.permute.xlu0 %317
        %v320 = vadd.f32 %v315, %v318
        %s321 = scalar_lea.vmem %s2, 8
        %v322 = vld [vmem:[%s321] sm:$0xff]
        %v323 = vmul.f32 %v320, %v322
        %v324 = vld [vmem:[%s245] sm:$0xff]
        %v325 = vld [vmem:[%s285] sm:$0xff]
        %v326 = vadd.f32 %v324, %v325
        %328 = vrot.lane.b32.xlu0 %v324, 124
        %v329 = vpop.permute.xlu0 %328
        %v331 = vadd.f32 %v326, %v329
        %333 = vrot.lane.b32.xlu0 %v325, 124
        %v334 = vpop.permute.xlu0 %333
        %v336 = vadd.f32 %v331, %v334
        %337 = vrot.lane.b32.xlu0 %v324, 120
        %v338 = vpop.permute.xlu0 %337
        %v340 = vadd.f32 %v336, %v338
        %v341 = vadd.f32 %v340, %v279
        %v342 = vadd.f32 %v341, %v277
        %v343 = vadd.f32 %v342, %v282
        %v344 = vadd.f32 %v343, %v298
        %345 = vrot.lane.b32.xlu0 %v279, 120
        %v346 = vpop.permute.xlu0 %345
        %v348 = vadd.f32 %v344, %v346
        %v349 = vadd.f32 %v348, %v288
        %v350 = vadd.f32 %v349, %v286
        %v351 = vadd.f32 %v350, %v291
        %v352 = vadd.f32 %v351, %v305
        %353 = vrot.lane.b32.xlu0 %v288, 120
        %v354 = vpop.permute.xlu0 %353
        %v356 = vadd.f32 %v352, %v354
        %v357 = vadd.f32 %v356, %v310
        %v358 = vadd.f32 %v357, %v308
        %v359 = vadd.f32 %v358, %v313
        %v360 = vadd.f32 %v359, %v318
        %361 = vrot.lane.b32.xlu0 %v310, 120
        %v362 = vpop.permute.xlu0 %361
        %v364 = vadd.f32 %v360, %v362
        %v365 = vld [vmem:[%s245 + $0x2] sm:$0xff]
        %v366 = vadd.f32 %v364, %v365
        %v367 = vld [vmem:[%s285 + $0x2] sm:$0xff]
        %v368 = vadd.f32 %v366, %v367
        %370 = vrot.lane.b32.xlu0 %v365, 124
        %v371 = vpop.permute.xlu0 %370
        %v373 = vadd.f32 %v368, %v371
        %375 = vrot.lane.b32.xlu0 %v367, 124
        %v376 = vpop.permute.xlu0 %375
        %v378 = vadd.f32 %v373, %v376
        %379 = vrot.lane.b32.xlu0 %v365, 120
        %v380 = vpop.permute.xlu0 %379
        %v382 = vadd.f32 %v378, %v380
        %s383 = scalar_lea.vmem %s2, 16
        %v384 = vld [vmem:[%s383] sm:$0xff]
        %v385 = vmul.f32 %v382, %v384
        %v386 = vld [vmem:[%s275] sm:$0xff]
        %388 = vrot.lane.b32.xlu0 %v323, 32
        %v389 = vpop.permute.xlu0 %388
        %392 = vrot.lane.b32.xlu0 %v385, 64
        %v393 = vpop.permute.xlu0 %392
        %396 = vrot.lane.b32.xlu0 %v386, 96
        %v397 = vpop.permute.xlu0 %396
        %vm399 = vcmask 261120
        %v400 = vsel %vm399, %v295, %v389
        %vm401 = vcmask 523264
        %v402 = vsel %vm401, %v400, %v393
        %vm403 = vcmask 785408
        %v404 = vsel %vm403, %v402, %v397
        %v405 = vld [vmem:[%s3] sm:$0xff]
        %v406 = vld [vmem:[%s3 + $0x8] sm:$0xff]
        %v407 = vld [vmem:[%s3 + $0x10] sm:$0xff]
        %v408 = vld [vmem:[%s3 + $0x18] sm:$0xff]
        %v409 = vld [vmem:[%s3 + $0x20] sm:$0xff]
        %v410 = vld [vmem:[%s3 + $0x28] sm:$0xff]
        %v411 = vld [vmem:[%s3 + $0x30] sm:$0xff]
        %v412 = vld [vmem:[%s3 + $0x38] sm:$0xff]
        %v413 = vld [vmem:[%s3 + $0x40] sm:$0xff]
        %v414 = vld [vmem:[%s3 + $0x48] sm:$0xff]
        %v415 = vld [vmem:[%s3 + $0x50] sm:$0xff]
        %v416 = vld [vmem:[%s3 + $0x58] sm:$0xff]
        %v417 = vld [vmem:[%s3 + $0x60] sm:$0xff]
        %v418 = vld [vmem:[%s3 + $0x68] sm:$0xff]
        %v419 = vld [vmem:[%s3 + $0x70] sm:$0xff]
        %v420 = vld [vmem:[%s3 + $0x78] sm:$0xff]
        %v421 = vld [vmem:[%s3 + $0x80] sm:$0xff]
        %v422 = vld [vmem:[%s3 + $0x88] sm:$0xff]
        %v423 = vld [vmem:[%s3 + $0x90] sm:$0xff]
        %v424 = vld [vmem:[%s3 + $0x98] sm:$0xff]
        %v425 = vsel %vm399, %v397, 0
        %427 = vmatprep.subr.mxu0 0.0
        %428 = vmatpush1.msra.mxu0 %v405
        %429 = vmatprep.subr.mxu0 0.0
        %430 = vmatpush1.msra.mxu0 %v406
        %431 = vmatprep.subr.mxu0 0.0
        %432 = vmatpush1.msra.mxu0 %v407
        %433 = vmatprep.subr.mxu0 0.0
        %434 = vmatpush1.msra.mxu0 %v408
        %435 = vmatprep.subr.mxu0 0.0
        %436 = vmatpush1.msra.mxu0 %v409
        %437 = vmatprep.subr.mxu0 0.0
        %438 = vmatpush1.msra.mxu0 %v410
        %439 = vmatprep.subr.mxu0 0.0
        %440 = vmatpush1.msra.mxu0 %v411
        %441 = vmatprep.subr.mxu0 0.0
        %442 = vmatpush1.msra.mxu0 %v412
        %443 = vmatprep.subr.mxu0 0.0
        %444 = vmatpush1.msra.mxu0 %v413
        %445 = vmatprep.subr.mxu0 0.0
        %446 = vmatpush1.msra.mxu0 %v414
        %447 = vmatprep.subr.mxu0 0.0
        %448 = vmatpush1.msra.mxu0 %v415
        %449 = vmatprep.subr.mxu0 0.0
        %450 = vmatpush1.msra.mxu0 %v416
        %451 = vmatprep.subr.mxu0 0.0
        %452 = vmatpush1.msra.mxu0 %v417
        %453 = vmatprep.subr.mxu0 0.0
        %454 = vmatpush1.msra.mxu0 %v418
        %455 = vmatprep.subr.mxu0 0.0
        %456 = vmatpush1.msra.mxu0 %v419
        %457 = vmatprep.subr.mxu0 0.0
        %458 = vmatpush1.msra.mxu0 %v420
        %459 = vmatprep.subr.mxu0 0.0
        %460 = vmatpush1.msra.mxu0 %v421
        %461 = vmatprep.subr.mxu0 0.0
        %462 = vmatpush1.msra.mxu0 %v422
        %463 = vmatprep.subr.mxu0 0.0
        %464 = vmatpush1.msra.mxu0 %v423
        %465 = vmatprep.subr.mxu0 0.0
        %466 = vmatpush1.msra.mxu0 %v424
        %467 = vmatprep.subr.mxu0 0.0
        %468 = vmatpush1.msra.mxu0 0.0
        %469 = vmatprep.subr.mxu0 0.0
        %470 = vmatpush1.msra.mxu0 0.0
        %471 = vmatprep.subr.mxu0 0.0
        %472 = vmatpush1.msra.mxu0 0.0
        %473 = vmatprep.subr.mxu0 0.0
        %474 = vmatpush1.msra.mxu0 0.0
        %475 = vmatprep.subr.mxu0 0.0
        %476 = vmatpush1.msra.mxu0 0.0
        %477 = vmatprep.subr.mxu0 0.0
        %478 = vmatpush1.msra.mxu0 0.0
        %479 = vmatprep.subr.mxu0 0.0
        %480 = vmatpush1.msra.mxu0 0.0
        %481 = vmatprep.subr.mxu0 0.0
        %482 = vmatpush1.msra.mxu0 0.0
        %483 = vmatprep.subr.mxu0 0.0
        %484 = vmatpush1.msra.mxu0 0.0
        %485 = vmatprep.subr.mxu0 0.0
        %486 = vmatpush1.msra.mxu0 0.0
        %487 = vmatprep.subr.mxu0 0.0
        %488 = vmatpush1.msra.mxu0 0.0
        %489 = vmatprep.subr.mxu0 0.0
        %490 = vmatpush1.msra.mxu0 0.0
        %491 = vmatprep.mubr.f32.mxu0 %v425
        %492 = vmatmul.mubr.f32.gmra.mrb[0].mxu0 %v404
        %v493 = vpop.f32.mrb[0].mxu0
        %v494 = vadd.f32 0.0, %v493
        %v495 = vpop.f32.mrb[0].mxu0
        %496 = vdwg.mxu0
        %v497 = vmax.f32 %v494, 0.0
        %498 = vst.msk [vmem:[%s271] sm:$0xff] %vm401, %v497
        %s499 = sand.u32 %s120, 1
        %s500 = scalar_lea.sflag [#allocation4], %s499
        %s501 = sand.u32 %s120, 1
        %s502 = smul.addr %s501, 8
        %s503 = scalar_lea.vmem [#allocation3], %s502
        // Predicated region
        $region75: #{tpu_custom_call.1} parent=69 // pred_check
          %p504 = pneg %p130
        $region76: #{tpu_custom_call.1} parent=69 // pred_check_branch
          %506 = sbr.rel (%p504) target = $region78
        $region77: #{tpu_custom_call.1} parent=69 // pred_region
          %s508 = ssub.s32 128, 128
          %509 = vsyncadd %s500, %s508
          %s510 = smul.addr %s18, 128
          %s511 = scalar_lea.hbm %s4, %s510
          %s513 = sshll.u32 %s503, 4
          %s514 = int_to_ptr.vmem [resolvable:$true] %s513
          %516 = dma.vmem_to_hbm [thread:$0]  %s514, 128, %s511, %s500
        $region78: #{tpu_custom_call.1} parent=69 // pred_fallthru
          _
      $region70: #{tpu_custom_call.1} parent=5 // pred_fallthru
        _
      %p517 = scmp.le.s32.totalorder 2, %s13
      // Predicated region
      $region79: #{tpu_custom_call.1} parent=5 // pred_check
        %p518 = pneg %p517
      $region80: #{tpu_custom_call.1} parent=5 // pred_check_branch
        %520 = sbr.rel (%p518) target = $region82
      $region81: #{tpu_custom_call.1} parent=5 // pred_region
        %s521 = ssub.s32 %s13, 2
        // Predicated region
        $region83: #{tpu_custom_call.1} parent=81 // pred_check
          %p522 = pneg %p136
        $region84: #{tpu_custom_call.1} parent=81 // pred_check_branch
          %524 = sbr.rel (%p522) target = $region86
        $region85: #{tpu_custom_call.1} parent=81 // pred_region
          %s525 = sand.u32 %s121, 1
          %s526 = scalar_lea.sflag [#allocation4], %s525
          %s527 = sand.u32 %s121, 1
          %s528 = smul.addr %s527, 8
          %s529 = scalar_lea.vmem [#allocation3], %s528
          %530 = dma.done %s526, 128
        $region86: #{tpu_custom_call.1} parent=81 // pred_fallthru
          _
      $region82: #{tpu_custom_call.1} parent=5 // pred_fallthru
        _
    $region6: #{tpu_custom_call.1} parent=1 // loop_footer
      %s17 = sadd.s32 1, %s13
    $region7: #{tpu_custom_call.1} parent=1 // loop_footer_branch
      %12 = sbr.rel target = $region3
    $region8: #{tpu_custom_call.1} parent=1 // loop_exit
      _
    %531 = vsyncpa [#allocation4], 1
    %s532 = scalar_lea.sflag [#allocation4], 1
    %533 = vsyncpa %s532, 1

</llo_original>
